<compile_context>
chip_gen: v7x
topology: tpu7x:2x2x1
jax: 0.10.0
libtpu: 0.0.40
codegen_flags: <defaults>
</compile_context>

<pallas_src>
import functools

import jax
import jax.numpy as jnp
from jax.experimental import pallas as pl
from jax.experimental.pallas import tpu as pltpu


def _round_up(x, m):
    return ((x + m - 1) // m) * m


def _vmem_limits():
    """Returns (compiler vmem cap, tile-sizing budget) in bytes."""
    phys = 64 << 20                     # conservative default: v7x per-core VMEM
    try:
        phys = int(pltpu.get_tpu_info().vmem_capacity_bytes)
    except Exception:
        pass
    limit = max(32 << 20, min(int(phys * 0.8), 110 << 20))
    return limit, int(limit * 0.85)


def _pick_tiles(B, N, D, J, feat_bytes, w_bytes, budget, block_b, block_n):
    """Choose (TB, TN) so the double-buffered working set fits `budget`."""
    lane = lambda x: _round_up(x, 128)
    sub = lambda x: _round_up(x, 8)

    def vmem_bytes(tb, tn):
        feats = 2 * tb * sub(tn) * lane(D) * feat_bytes      # double-buffered stream
        scores = 2 * tb * sub(tn) * 128 * feat_bytes         # lane-1 block pads to 128
        weight = 2 * sub(D) * lane(J) * w_bytes              # resident weight
        bias = 2 * 8 * lane(J) * w_bytes
        outb = 2 * sub(tb) * lane(J) * feat_bytes
        acc = sub(tb) * lane(D) * 4                          # f32 scratch accumulator
        return feats + scores + weight + bias + outb + acc

    # ---- batch tile --------------------------------------------------------
    block_b = max(8, (block_b // 8) * 8)
    if B > block_b:
        tb = block_b
    elif B >= 16:
        # keep >=2 batch tiles so the "parallel" axis can use both TCs (v7x)
        tb = _round_up((B + 1) // 2, 8)
    else:
        tb = B                                               # single full-dim tile

    # ---- N tile ------------------------------------------------------------
    def pick_tn(tb_):
        if block_n is not None:
            tn_ = N if block_n >= N else max(8, (block_n // 8) * 8)
            return tn_ if vmem_bytes(tb_, tn_) <= budget else None
        for tn_ in [N] + [t for t in (512, 256, 128, 64, 32, 16, 8) if t < N]:
            if vmem_bytes(tb_, tn_) <= budget:
                return tn_
        return None

    tn = pick_tn(tb)
    while tn is None and tb > 8:
        tb = max(8, ((tb // 2) // 8) * 8)                    # shrink batch tile
        tn = pick_tn(tb)
    if tn is None:
        tn = N if N <= 8 else 8                              # last resort
    return tb, tn


def _relation_decoder_kernel(s_ref, f_ref, w_ref, b_ref, o_ref, acc_ref, *,
                             n_total, tn):
    # s_ref: (TB, TN, 1)  f_ref: (TB, TN, D)  w_ref: (D, J)  b_ref: (1, J)
    # o_ref: (TB, J)      acc_ref: (TB, D) f32 scratch, persists over the N axis
    n = pl.program_id(1)

    @pl.when(n == 0)
    def _init():
        acc_ref[...] = jnp.zeros_like(acc_ref)

    # Score-weighted partial sum over this N chunk in the *input* dtype
    # (VPU multiply + XLU sublane reduce; the MXU stays free); accumulate f32.
    prod = s_ref[...] * f_ref[...]                           # (TB, TN, D)
    if n_total % tn != 0:
        # Ragged last N chunk: out-of-bounds rows are unspecified -> mask them.
        pos = jax.lax.broadcasted_iota(jnp.int32, prod.shape[:2] + (1,), 1)
        prod = jnp.where(n * tn + pos < n_total, prod, jnp.zeros_like(prod))
    acc_ref[...] += jnp.sum(prod, axis=1).astype(jnp.float32)

    @pl.when(n == pl.num_programs(1) - 1)
    def _finalize():
        # One (TB, D) @ (D, J) MXU matmul per batch tile.  Weight stays in its
        # native dtype (bf16 feeds the MXU directly); accumulation is f32.
        fused = acc_ref[...].astype(w_ref.dtype)
        out = jnp.dot(fused, w_ref[...], preferred_element_type=jnp.float32)
        out = out + b_ref[...].astype(jnp.float32)
        o_ref[...] = out.astype(o_ref.dtype)


def relation_decoder(rel_feats, total_ann_score, weight_t, bias, *,
                     block_b=128, block_n=None):
    """rel_feats: (B, N, D), total_ann_score: (B, N), weight_t: (D, J), bias: (J,).

    Computes Linear(einsum('bn,bnd->bd', score, rel_feats)).  Inputs may be
    f32 or bf16 (streaming bf16 halves HBM traffic); accumulation is f32.
    """
    B, N, D = rel_feats.shape
    J = weight_t.shape[1]
    out_dtype = rel_feats.dtype

    vmem_limit, budget = _vmem_limits()
    TB, TN = _pick_tiles(
        B, N, D, J,
        jnp.dtype(rel_feats.dtype).itemsize,
        jnp.dtype(weight_t.dtype).itemsize,
        budget, block_b, block_n)

    grid = (pl.cdiv(B, TB), pl.cdiv(N, TN))

    # Tiny metadata reshapes only — no copies of the large rel_feats tensor.
    scores3 = total_ann_score.reshape(B, N, 1)
    bias2 = bias.reshape(1, J)

    kernel = functools.partial(_relation_decoder_kernel, n_total=N, tn=TN)

    return pl.pallas_call(
        kernel,
        out_shape=jax.ShapeDtypeStruct((B, J), out_dtype),
        grid_spec=pltpu.PrefetchScalarGridSpec(
            num_scalar_prefetch=0,
            grid=grid,
            in_specs=[
                pl.BlockSpec((TB, TN, 1), lambda i, n: (i, n, 0)),   # scores
                pl.BlockSpec((TB, TN, D), lambda i, n: (i, n, 0)),   # rel_feats (full D)
                pl.BlockSpec((D, J), lambda i, n: (0, 0)),           # weight (resident)
                pl.BlockSpec((1, J), lambda i, n: (0, 0)),           # bias   (resident)
            ],
            out_specs=pl.BlockSpec((TB, J), lambda i, n: (i, 0)),    # written on last n
            scratch_shapes=[pltpu.VMEM((TB, D), jnp.float32)],
        ),
        compiler_params=pltpu.CompilerParams(
            dimension_semantics=("parallel", "arbitrary"),
            vmem_limit_bytes=vmem_limit,
        ),
    )(scores3, rel_feats, weight_t, bias2)


def init_params(key, fc7_dim, jemb_dim):
    """Deterministic synthetic params for nn.Linear(fc7_dim + 5, jemb_dim)."""
    D = fc7_dim + 5
    kw, kb = jax.random.split(key)
    scale = 1.0 / jnp.sqrt(D)
    # PyTorch Linear stores weight as (out, in); we keep the transposed (in, out).
    weight_t = jax.random.uniform(kw, (D, jemb_dim), jnp.float32, -scale, scale)
    bias = jax.random.uniform(kb, (jemb_dim,), jnp.float32, -scale, scale)
    return weight_t, bias


if __name__ == "__main__":
    # Config consistent with the module: fc7_dim + 5 = 32, jemb_dim = 32.
    opt = {"jemb_dim": 32, "word_vec_size": 16, "fc7_dim": 27}
    B, N = 2, 8
    D = opt["fc7_dim"] + 5
    J = opt["jemb_dim"]

    key = jax.random.PRNGKey(0)
    k1, k2, k3 = jax.random.split(key, 3)
    rel_feats = jax.random.normal(k1, (B, N, D), jnp.float32)
    total_ann_score = jax.nn.softmax(jax.random.normal(k2, (B, N), jnp.float32), axis=-1)
    weight_t, bias = init_params(k3, opt["fc7_dim"], opt["jemb_dim"])

    out = jax.block_until_ready(
        relation_decoder(rel_feats, total_ann_score, weight_t, bias))
    ref = jnp.einsum("bn,bnd->bd", total_ann_score, rel_feats) @ weight_t + bias
    assert out.shape == (B, J)
    assert jnp.allclose(out, ref, atol=1e-5, rtol=1e-5)

    # Second config exercising the ragged batch tail, the streamed-N reduction
    # axis and the in-kernel N mask (B, N, D, J all non-multiples of the tiles).
    B2, N2, D2, J2 = 20, 13, 35, 40
    k4, k5, k6, k7 = jax.random.split(jax.random.PRNGKey(1), 4)
    rel2 = jax.random.normal(k4, (B2, N2, D2), jnp.float32)
    sc2 = jax.nn.softmax(jax.random.normal(k5, (B2, N2), jnp.float32), axis=-1)
    w2 = jax.random.normal(k6, (D2, J2), jnp.float32) * 0.1
    b2 = jax.random.normal(k7, (J2,), jnp.float32) * 0.1
    out2 = jax.block_until_ready(
        relation_decoder(rel2, sc2, w2, b2, block_b=8, block_n=8))
    ref2 = jnp.einsum("bn,bnd->bd", sc2, rel2) @ w2 + b2
    assert out2.shape == (B2, J2)
    assert jnp.allclose(out2, ref2, atol=1e-4, rtol=1e-4)

    print("KERNEL_OK")
</pallas_src>

<mosaic_0001>
module attributes {stable_mosaic.version = 11 : i64} {
  func.func @_relation_decoder_kernel(%arg0: i32, %arg1: i32, %arg2: memref<2x8x1xf32, #tpu.memory_space<vmem>>, %arg3: memref<2x8x32xf32, #tpu.memory_space<vmem>>, %arg4: memref<32x32xf32, #tpu.memory_space<vmem>>, %arg5: memref<1x32xf32, #tpu.memory_space<vmem>>, %arg6: memref<2x32xf32, #tpu.memory_space<vmem>>, %arg7: memref<2x32xf32, #tpu.memory_space<vmem>>) attributes {dimension_semantics = [#tpu.dimension_semantics<parallel>, #tpu.dimension_semantics<arbitrary>], iteration_bounds = array<i64: 1, 1>, scalar_prefetch = 0 : i64, scratch_operands = 1 : i64, tpu.core_type = #tpu.core_type<tc>, window_params = [{transform_indices = @transform_0, window_bounds = array<i64: 2, 8, 1>}, {transform_indices = @transform_1, window_bounds = array<i64: 2, 8, 32>}, {pipeline_mode = #tpu.pipeline_mode<synchronous>, transform_indices = @transform_2, window_bounds = array<i64: 32, 32>}, {pipeline_mode = #tpu.pipeline_mode<synchronous>, transform_indices = @transform_3, window_bounds = array<i64: 1, 32>}, {transform_indices = @transform_4, window_bounds = array<i64: 2, 32>}]} {
    %c0_i32 = arith.constant 0 : i32
    %0 = arith.cmpi eq, %arg1, %c0_i32 : i32
    %1 = arith.extui %0 : i1 to i32
    %c0_i32_0 = arith.constant 0 : i32
    %2 = arith.cmpi ne, %1, %c0_i32_0 : i32
    scf.if %2 {
      %cst_12 = arith.constant 0.000000e+00 : f32
      %14 = vector.broadcast %cst_12 : f32 to vector<2x32xf32>
      %c0_13 = arith.constant 0 : index
      %c0_14 = arith.constant 0 : index
      %15 = vector.load %arg7[%c0_13, %c0_14] : memref<2x32xf32, #tpu.memory_space<vmem>>, vector<2x32xf32>
      tpu.vector_store %arg7[%c0_13, %c0_14], %14 {strides = array<i32>} : memref<2x32xf32, #tpu.memory_space<vmem>>, vector<2x32xf32>,
    } else {
    }
    %c0 = arith.constant 0 : index
    %c0_1 = arith.constant 0 : index
    %c0_2 = arith.constant 0 : index
    %3 = vector.load %arg2[%c0, %c0_1, %c0_2] : memref<2x8x1xf32, #tpu.memory_space<vmem>>, vector<2x8x1xf32>
    %c0_3 = arith.constant 0 : index
    %c0_4 = arith.constant 0 : index
    %c0_5 = arith.constant 0 : index
    %4 = vector.load %arg3[%c0_3, %c0_4, %c0_5] : memref<2x8x32xf32, #tpu.memory_space<vmem>>, vector<2x8x32xf32>
    %5 = vector.broadcast %3 : vector<2x8x1xf32> to vector<2x8x32xf32>
    %6 = arith.mulf %5, %4 : vector<2x8x32xf32>
    %c0_6 = arith.constant 0 : index
    %c0_7 = arith.constant 0 : index
    %7 = vector.load %arg7[%c0_6, %c0_7] : memref<2x32xf32, #tpu.memory_space<vmem>>, vector<2x32xf32>
    %cst = arith.constant dense<0.000000e+00> : vector<2x32xf32>
    %8 = vector.multi_reduction <add>, %6, %cst [1] : vector<2x8x32xf32> to vector<2x32xf32>
    %9 = arith.addf %7, %8 : vector<2x32xf32>
    %c0_8 = arith.constant 0 : index
    %c0_9 = arith.constant 0 : index
    %10 = vector.load %arg7[%c0_8, %c0_9] : memref<2x32xf32, #tpu.memory_space<vmem>>, vector<2x32xf32>
    tpu.vector_store %arg7[%c0_8, %c0_9], %9 {strides = array<i32>} : memref<2x32xf32, #tpu.memory_space<vmem>>, vector<2x32xf32>,
    %c0_i32_10 = arith.constant 0 : i32
    %11 = arith.cmpi eq, %arg1, %c0_i32_10 : i32
    %12 = arith.extui %11 : i1 to i32
    %c0_i32_11 = arith.constant 0 : i32
    %13 = arith.cmpi ne, %12, %c0_i32_11 : i32
    scf.if %13 {
      %c0_12 = arith.constant 0 : index
      %c0_13 = arith.constant 0 : index
      %14 = vector.load %arg7[%c0_12, %c0_13] : memref<2x32xf32, #tpu.memory_space<vmem>>, vector<2x32xf32>
      %c0_14 = arith.constant 0 : index
      %c0_15 = arith.constant 0 : index
      %15 = vector.load %arg4[%c0_14, %c0_15] : memref<32x32xf32, #tpu.memory_space<vmem>>, vector<32x32xf32>
      %cst_16 = arith.constant dense<0.000000e+00> : vector<2x32xf32>
      %16 = tpu.matmul %14, %15, %cst_16 {dimension_numbers = #tpu.dot_dimension_numbers<[1], [0], [0], [1], [0, 0, 1, 1], [], []>} : vector<2x32xf32>, vector<32x32xf32>, vector<2x32xf32> -> vector<2x32xf32>
      %c0_17 = arith.constant 0 : index
      %c0_18 = arith.constant 0 : index
      %17 = vector.load %arg5[%c0_17, %c0_18] : memref<1x32xf32, #tpu.memory_space<vmem>>, vector<1x32xf32>
      %18 = vector.broadcast %17 : vector<1x32xf32> to vector<2x32xf32>
      %19 = arith.addf %16, %18 : vector<2x32xf32>
      %c0_19 = arith.constant 0 : index
      %c0_20 = arith.constant 0 : index
      %20 = vector.load %arg6[%c0_19, %c0_20] : memref<2x32xf32, #tpu.memory_space<vmem>>, vector<2x32xf32>
      tpu.vector_store %arg6[%c0_19, %c0_20], %19 {strides = array<i32>} : memref<2x32xf32, #tpu.memory_space<vmem>>, vector<2x32xf32>,
    } else {
    }
    return
  }
  func.func @transform_0(%arg0: i32, %arg1: i32) -> (i32, i32, i32) {
    %c0_i32 = arith.constant 0 : i32
    %c0_i32_0 = arith.constant 0 : i32
    return %arg0, %arg1, %c0_i32 : i32, i32, i32
  }
  func.func @transform_1(%arg0: i32, %arg1: i32) -> (i32, i32, i32) {
    %c0_i32 = arith.constant 0 : i32
    %c0_i32_0 = arith.constant 0 : i32
    return %arg0, %arg1, %c0_i32 : i32, i32, i32
  }
  func.func @transform_2(%arg0: i32, %arg1: i32) -> (i32, i32) {
    %c0_i32 = arith.constant 0 : i32
    %c0_i32_0 = arith.constant 0 : i32
    %c0_i32_1 = arith.constant 0 : i32
    return %c0_i32, %c0_i32_0 : i32, i32
  }
  func.func @transform_3(%arg0: i32, %arg1: i32) -> (i32, i32) {
    %c0_i32 = arith.constant 0 : i32
    %c0_i32_0 = arith.constant 0 : i32
    %c0_i32_1 = arith.constant 0 : i32
    return %c0_i32, %c0_i32_0 : i32, i32
  }
  func.func @transform_4(%arg0: i32, %arg1: i32) -> (i32, i32) {
    %c0_i32 = arith.constant 0 : i32
    %c0_i32_0 = arith.constant 0 : i32
    return %arg0, %c0_i32 : i32, i32
  }
}

</mosaic_0001>

<llo_original>
// kernel: tpu_custom_call.1
$region0: #{tpu_custom_call.1}
  #allocation0 [shape = 'u32[]', space=smem, size = 0x4, offset = 0x4, fixed_abs, tag = 'smem constant byte address 0x4 - core index']
  #allocation1 [shape = 'u32[144,128]{1,0:T(1,128)}', space=vmem, size = 0x12000, scoped, tag = 'internal scratch']
  #allocation2 [shape = 'f32[2,32]{1,0:T(2,128)}', space=vmem, size = 0x400, scoped, tag = 'scratch operand']
  %s0 = inlined_call_operand.vmem [shape: f32[2,8,1], index: 0, kind: input, shape index: {}]
  %s1 = inlined_call_operand.vmem [shape: f32[2,8,32], index: 1, kind: input, shape index: {}]
  %s2 = inlined_call_operand.hbm [shape: f32[32,32], index: 2, kind: input, shape index: {}]
  %s3 = inlined_call_operand.vmem [shape: f32[1,32], index: 3, kind: input, shape index: {}]
  %s4 = inlined_call_operand.hbm [shape: f32[2,32], index: 4, kind: output, shape index: {}]
  %s5 = sld [smem:[#allocation0]]
  $region38: #{tpu_custom_call.1} parent=0
    _
  %s7 = ssub.s32 1, %s5
  %s8 = scalar_select 0, %s7, %s5
  $region1: #{tpu_custom_call.1} parent=0
    #allocation3 [shape = 'u8[16384]{0}', space=vmem, size = 0x4000, scoped, tag = 'input window, operand 2, single buffered']
    #allocation4 [shape = 's32[1]{0}', space=sflag, size = 0x4, scoped, tag = 'scoped memory for tpu_custom_call.1']
    #allocation5 [shape = 's32[1]{0}', space=sflag, size = 0x4, scoped, tag = 'scoped memory for tpu_custom_call.1']
    #allocation6 [shape = 'u8[1024]{0}', space=vmem, size = 0x400, scoped, tag = 'output window, operand 0, single buffered']
    %9 = vsyncpa [#allocation4], 0
    %10 = vsyncpa [#allocation5], 0
    // Predicated region
    $region2: #{tpu_custom_call.1} parent=1 // pred_check
      _
    $region3: #{tpu_custom_call.1} parent=1 // pred_check_branch
      %12 = sbr.rel (0) target = $region5
    $region4: #{tpu_custom_call.1} parent=1 // pred_region
      _
    $region5: #{tpu_custom_call.1} parent=1 // pred_fallthru
      _
    // Predicated region
    $region6: #{tpu_custom_call.1} parent=1 // pred_check
      _
    $region7: #{tpu_custom_call.1} parent=1 // pred_check_branch
      %14 = sbr.rel (0) target = $region9
    $region8: #{tpu_custom_call.1} parent=1 // pred_region
      _
    $region9: #{tpu_custom_call.1} parent=1 // pred_fallthru
      _
    // Predicated region
    $region10: #{tpu_custom_call.1} parent=1 // pred_check
      _
    $region11: #{tpu_custom_call.1} parent=1 // pred_check_branch
      %16 = sbr.rel (0) target = $region13
    $region12: #{tpu_custom_call.1} parent=1 // pred_region
      %s18 = ssub.s32 512, 512
      %19 = vsyncadd [#allocation4], %s18
      %s20 = sshll.u32 [#allocation3], 4
      %s21 = int_to_ptr.vmem [resolvable:$true] %s20
      %26 = dma.hbm_to_vmem [thread:$0]  %s2, 512, %s21, [#allocation4], 128, 128, 8
    $region13: #{tpu_custom_call.1} parent=1 // pred_fallthru
      _
    // Predicated region
    $region14: #{tpu_custom_call.1} parent=1 // pred_check
      _
    $region15: #{tpu_custom_call.1} parent=1 // pred_check_branch
      %28 = sbr.rel (0) target = $region17
    $region16: #{tpu_custom_call.1} parent=1 // pred_region
      _
    $region17: #{tpu_custom_call.1} parent=1 // pred_fallthru
      _
    // Predicated region
    $region18: #{tpu_custom_call.1} parent=1 // pred_check
      _
    $region19: #{tpu_custom_call.1} parent=1 // pred_check_branch
      %30 = sbr.rel (0) target = $region21
    $region20: #{tpu_custom_call.1} parent=1 // pred_region
      %31 = dma.done [#allocation4], 512
    $region21: #{tpu_custom_call.1} parent=1 // pred_fallthru
      _
    %p32 = scmp.eq.s32.totalorder 0, 0
    // Predicated region
    $region22: #{tpu_custom_call.1} parent=1 // pred_check
      %p33 = pneg %p32
    $region23: #{tpu_custom_call.1} parent=1 // pred_check_branch
      %35 = sbr.rel (%p33) target = $region25
    $region24: #{tpu_custom_call.1} parent=1 // pred_region
      %vm36 = vcmask 254976
      %37 = vst.msk [vmem:[#allocation2] sm:$0x3] %vm36, 0.0
    $region25: #{tpu_custom_call.1} parent=1 // pred_fallthru
      _
    %v38 = vld [vmem:[%s0] sm:$0xff]
    %v39 = vld [vmem:[%s0 + $0x8] sm:$0xff]
    %v40 = vld [vmem:[%s1] sm:$0xff]
    %v41 = vld [vmem:[%s1 + $0x8] sm:$0xff]
    %43 = vset.pattern.permute.xlu0 0
    %44 = vperm.xlu0 %43, %v38
    %v45 = vpop.permute.xlu0 %44
    %48 = vset.pattern.permute.xlu0 0
    %49 = vperm.xlu0 %48, %v39
    %v50 = vpop.permute.xlu0 %49
    %v52 = vmul.f32 %v45, %v40
    %v53 = vmul.f32 %v50, %v41
    %v54 = vld [vmem:[#allocation2] sm:$0x3]
    %vm55 = vcmask 261120
    %v56 = vsel %vm55, %v52, 0.0
    %v57 = vrot.slane %v56, 4
    %v58 = vadd.f32 %v56, %v57
    %v59 = vrot.slane %v58, 2
    %v60 = vadd.f32 %v58, %v59
    %v61 = vrot.slane %v60, 1
    %v62 = vadd.f32 %v60, %v61
    %v63 = vsel %vm55, %v53, 0.0
    %v64 = vrot.slane %v63, 4
    %v65 = vadd.f32 %v63, %v64
    %v66 = vrot.slane %v65, 2
    %v67 = vadd.f32 %v65, %v66
    %v68 = vrot.slane %v67, 1
    %v69 = vadd.f32 %v67, %v68
    %vm72 = vcmask 1041409
    %v73 = vsel %vm72, %v69, %v62
    %v75 = vadd.f32 %v54, %v73
    %vm76 = vcmask 254976
    %77 = vst.msk [vmem:[#allocation2] sm:$0x3] %vm76, %v75
    // Predicated region
    $region26: #{tpu_custom_call.1} parent=1 // pred_check
      %p78 = pneg %p32
    $region27: #{tpu_custom_call.1} parent=1 // pred_check_branch
      %80 = sbr.rel (%p78) target = $region29
    $region28: #{tpu_custom_call.1} parent=1 // pred_region
      %v81 = vld [vmem:[#allocation2] sm:$0x3]
      %v82 = vld [vmem:[#allocation3] sm:$0xff]
      %v83 = vld [vmem:[#allocation3 + $0x8] sm:$0xff]
      %v84 = vld [vmem:[#allocation3 + $0x10] sm:$0xff]
      %v85 = vld [vmem:[#allocation3 + $0x18] sm:$0xff]
      %v86 = vld [vmem:[%s3] sm:$0x1]
      %v88 = vlaneseq
      %v89 = vshrl.u32 %v88, 7
      %v90 = vsub.s32 0, %v89
      %v91 = vrot.slane %v86, %v90
      %v94 = vsel %vm55, %v81, 0
      %96 = vmatprep.subr.mxu0 0.0
      %97 = vmatpush1.msra.mxu0 %v82
      %98 = vmatprep.subr.mxu0 0.0
      %99 = vmatpush1.msra.mxu0 %v83
      %100 = vmatprep.subr.mxu0 0.0
      %101 = vmatpush1.msra.mxu0 %v84
      %102 = vmatprep.subr.mxu0 0.0
      %103 = vmatpush1.msra.mxu0 %v85
      %104 = vmatprep.subr.mxu0 0.0
      %105 = vmatpush1.msra.mxu0 0.0
      %106 = vmatprep.subr.mxu0 0.0
      %107 = vmatpush1.msra.mxu0 0.0
      %108 = vmatprep.subr.mxu0 0.0
      %109 = vmatpush1.msra.mxu0 0.0
      %110 = vmatprep.subr.mxu0 0.0
      %111 = vmatpush1.msra.mxu0 0.0
      %112 = vmatprep.subr.mxu0 0.0
      %113 = vmatpush1.msra.mxu0 0.0
      %114 = vmatprep.subr.mxu0 0.0
      %115 = vmatpush1.msra.mxu0 0.0
      %116 = vmatprep.subr.mxu0 0.0
      %117 = vmatpush1.msra.mxu0 0.0
      %118 = vmatprep.subr.mxu0 0.0
      %119 = vmatpush1.msra.mxu0 0.0
      %120 = vmatprep.subr.mxu0 0.0
      %121 = vmatpush1.msra.mxu0 0.0
      %122 = vmatprep.subr.mxu0 0.0
      %123 = vmatpush1.msra.mxu0 0.0
      %124 = vmatprep.subr.mxu0 0.0
      %125 = vmatpush1.msra.mxu0 0.0
      %126 = vmatprep.subr.mxu0 0.0
      %127 = vmatpush1.msra.mxu0 0.0
      %128 = vmatprep.subr.mxu0 0.0
      %129 = vmatpush1.msra.mxu0 0.0
      %130 = vmatprep.subr.mxu0 0.0
      %131 = vmatpush1.msra.mxu0 0.0
      %132 = vmatprep.subr.mxu0 0.0
      %133 = vmatpush1.msra.mxu0 0.0
      %134 = vmatprep.subr.mxu0 0.0
      %135 = vmatpush1.msra.mxu0 0.0
      %136 = vmatprep.subr.mxu0 0.0
      %137 = vmatpush1.msra.mxu0 0.0
      %138 = vmatprep.subr.mxu0 0.0
      %139 = vmatpush1.msra.mxu0 0.0
      %140 = vmatprep.subr.mxu0 0.0
      %141 = vmatpush1.msra.mxu0 0.0
      %142 = vmatprep.subr.mxu0 0.0
      %143 = vmatpush1.msra.mxu0 0.0
      %144 = vmatprep.subr.mxu0 0.0
      %145 = vmatpush1.msra.mxu0 0.0
      %146 = vmatprep.subr.mxu0 0.0
      %147 = vmatpush1.msra.mxu0 0.0
      %148 = vmatprep.subr.mxu0 0.0
      %149 = vmatpush1.msra.mxu0 0.0
      %150 = vmatprep.subr.mxu0 0.0
      %151 = vmatpush1.msra.mxu0 0.0
      %152 = vmatprep.subr.mxu0 0.0
      %153 = vmatpush1.msra.mxu0 0.0
      %154 = vmatprep.subr.mxu0 0.0
      %155 = vmatpush1.msra.mxu0 0.0
      %156 = vmatprep.subr.mxu0 0.0
      %157 = vmatpush1.msra.mxu0 0.0
      %158 = vmatprep.subr.mxu0 0.0
      %159 = vmatpush1.msra.mxu0 0.0
      %160 = vmatprep.mubr.f32.mxu0 0.0
      %161 = vmatmul.mubr.f32.gmra.mrb[0].mxu0 %v94
      %v162 = vpop.f32.mrb[0].mxu0
      %v163 = vadd.f32 %v91, %v162
      %v164 = vpop.f32.mrb[0].mxu0
      %165 = vdwg.mxu0
      %166 = vst.msk [vmem:[#allocation6] sm:$0x3] %vm76, %v163
    $region29: #{tpu_custom_call.1} parent=1 // pred_fallthru
      _
    // Predicated region
    $region30: #{tpu_custom_call.1} parent=1 // pred_check
      _
    $region31: #{tpu_custom_call.1} parent=1 // pred_check_branch
      %168 = sbr.rel (0) target = $region33
    $region32: #{tpu_custom_call.1} parent=1 // pred_region
      %s170 = ssub.s32 32, 32
      %171 = vsyncadd [#allocation5], %s170
      %s173 = sshll.u32 [#allocation6], 4
      %s174 = int_to_ptr.vmem [resolvable:$true] %s173
      %176 = dma.vmem_to_hbm [thread:$0]  %s174, 32, %s4, [#allocation5]
    $region33: #{tpu_custom_call.1} parent=1 // pred_fallthru
      _
    // Predicated region
    $region34: #{tpu_custom_call.1} parent=1 // pred_check
      _
    $region35: #{tpu_custom_call.1} parent=1 // pred_check_branch
      %178 = sbr.rel (0) target = $region37
    $region36: #{tpu_custom_call.1} parent=1 // pred_region
      %179 = dma.done [#allocation5], 32
    $region37: #{tpu_custom_call.1} parent=1 // pred_fallthru
      _
    %180 = vsyncpa [#allocation4], 1
    %181 = vsyncpa [#allocation5], 1

</llo_original>
